<compile_context>
chip_gen: v7x
topology: tpu7x:2x2x1
jax: 0.10.0
libtpu: 0.0.40
codegen_flags: <defaults>
</compile_context>

<pallas_src>
import jax
import jax.numpy as jnp
from jax.experimental import pallas as pl
from jax.experimental.pallas import tpu as pltpu


_LANE = 128
_NEG_FILL = -1e30          # padded-logit fill: exp(NEG_FILL - m) underflows to 0
_IGNORE_INDEX = -100       # PyTorch CrossEntropyLoss default


# ----------------------------------------------------------------------------
# One-time parameter preparation (hoisted out of the per-forward hot path).
# ----------------------------------------------------------------------------
def prepare_classifier_params(classifier_w, classifier_b, hidden1,
                              param_dtype=jnp.bfloat16):
    """classifier_w: (num_labels, H1+H2) PyTorch nn.Linear layout.
       classifier_b: (num_labels,)
    Returns lane-dense, pre-split params:
       w1_pad: (H1, Lp), w2_pad: (H2, Lp) in param_dtype (default bf16),
               Lp = 128-aligned num_labels, zero-padded columns.
       b_pad : (1, Lp) f32 with padded columns set to a large negative value
               (must stay f32 — the -1e30 fill is only safe in f32)."""
    num_labels, h_total = classifier_w.shape
    lp = max(_LANE, pl.cdiv(num_labels, _LANE) * _LANE)
    w_pad = jnp.zeros((h_total, lp), jnp.float32).at[:, :num_labels].set(
        classifier_w.astype(jnp.float32).T)
    w1_pad = w_pad[:hidden1].astype(param_dtype)
    w2_pad = w_pad[hidden1:].astype(param_dtype)
    b_pad = jnp.full((1, lp), _NEG_FILL, jnp.float32).at[0, :num_labels].set(
        classifier_b.astype(jnp.float32))
    return w1_pad, w2_pad, b_pad


# ----------------------------------------------------------------------------
# Kernels (no grid — all operands fit comfortably in VMEM as single blocks).
# ----------------------------------------------------------------------------
def _compute_padded_logits(o1_ref, o2_ref, w1_ref, w2_ref, b_ref):
    # Two MXU contractions into one f32 accumulator replace the lane-concat +
    # single contraction (no XLU lane shuffle, layout-independent).
    x1 = o1_ref[...].astype(w1_ref.dtype)
    x2 = o2_ref[...].astype(w2_ref.dtype)
    return (jnp.dot(x1, w1_ref[...], preferred_element_type=jnp.float32)
            + jnp.dot(x2, w2_ref[...], preferred_element_type=jnp.float32)
            + b_ref[...])                                            # (B, Lp) f32


def _logits_kernel(o1_ref, o2_ref, w1_ref, w2_ref, b_ref, logits_ref):
    # Lane-dense store of the full padded block; wrapper slices to num_labels.
    logits_ref[...] = _compute_padded_logits(o1_ref, o2_ref, w1_ref, w2_ref, b_ref)


def _fused_forward_kernel(o1_ref, o2_ref, w1_ref, w2_ref, b_ref, labels_ref,
                          logits_ref, loss_ref):
    logits_p = _compute_padded_logits(o1_ref, o2_ref, w1_ref, w2_ref, b_ref)
    logits_ref[...] = logits_p                                       # (B, Lp) f32

    # --- CrossEntropyLoss (single_label_classification, ignore_index=-100) ---
    # Padded columns carry bias = -1e30 (f32), so they never win the max and
    # their exp underflows to exactly 0 in the log-sum-exp.
    labels = labels_ref[...]                                         # (B, 1) int32
    m = jnp.max(logits_p, axis=-1, keepdims=True)                    # (B, 1)
    lse = m + jnp.log(jnp.sum(jnp.exp(logits_p - m), axis=-1, keepdims=True))
    classes = jax.lax.broadcasted_iota(jnp.int32, logits_p.shape, 1) # (B, Lp)
    true_logit = jnp.sum(jnp.where(classes == labels, logits_p, 0.0),
                         axis=-1, keepdims=True)                     # (B, 1)
    per_example = lse - true_logit                                   # (B, 1)
    valid = (labels != _IGNORE_INDEX).astype(jnp.float32)            # (B, 1)
    total = jnp.sum(per_example * valid, axis=0, keepdims=True)      # (1, 1)
    count = jnp.sum(valid, axis=0, keepdims=True)                    # (1, 1)
    # NOTE: if every label is ignore_index, count == 0 and loss = 0/0 = NaN,
    # matching PyTorch's mean-reduction behavior — intentionally not guarded.
    loss_ref[...] = total / count


# ----------------------------------------------------------------------------
# Forward wrapper.
# ----------------------------------------------------------------------------
def _vmem_spec():
    return pl.BlockSpec(memory_space=pltpu.MemorySpace.VMEM)


def omics_omics_inter_forward(omics1_out, omics2_out, w1_pad, w2_pad, b_pad,
                              num_labels, labels=None):
    """Pallas implementation of OmicsOmicsInter.forward (classifier + CE loss).

    omics1_out: (B, H1) f32 — pooled output of omics1_model
    omics2_out: (B, H2) f32 — pooled output of omics2_model
    w1_pad, w2_pad, b_pad: outputs of prepare_classifier_params (cached)
    num_labels: int, the true (unpadded) number of classes
    labels:     optional (B,) int — single_label_classification path
    Returns (loss_or_None, logits) with logits shape (B, num_labels)."""
    batch, h1 = omics1_out.shape
    h2 = omics2_out.shape[1]
    lp = w1_pad.shape[1]

    def nbytes(a):
        return a.size * jnp.dtype(a.dtype).itemsize

    in_bytes = (nbytes(omics1_out) + nbytes(omics2_out)
                + nbytes(w1_pad) + nbytes(w2_pad) + nbytes(b_pad))
    matmul_flops = 2 * batch * (h1 + h2) * lp

    if labels is None:
        cost = pl.CostEstimate(
            flops=matmul_flops,
            transcendentals=0,
            bytes_accessed=in_bytes + batch * lp * 4)
        logits_pad = pl.pallas_call(
            _logits_kernel,
            out_shape=jax.ShapeDtypeStruct((batch, lp), jnp.float32),
            in_specs=[_vmem_spec() for _ in range(5)],
            out_specs=_vmem_spec(),
            cost_estimate=cost,
        )(omics1_out, omics2_out, w1_pad, w2_pad, b_pad)
        return None, logits_pad[:, :num_labels]

    labels_2d = labels.reshape(batch, 1).astype(jnp.int32)
    cost = pl.CostEstimate(
        flops=matmul_flops + 8 * batch * lp,
        transcendentals=batch * (lp + 1),
        bytes_accessed=in_bytes + nbytes(labels_2d) + batch * lp * 4 + 4)
    logits_pad, loss = pl.pallas_call(
        _fused_forward_kernel,
        out_shape=(jax.ShapeDtypeStruct((batch, lp), jnp.float32),
                   jax.ShapeDtypeStruct((1, 1), jnp.float32)),
        in_specs=[_vmem_spec() for _ in range(6)],
        out_specs=(_vmem_spec(), _vmem_spec()),
        cost_estimate=cost,
    )(omics1_out, omics2_out, w1_pad, w2_pad, b_pad, labels_2d)
    return loss[0, 0], logits_pad[:, :num_labels]


# ----------------------------------------------------------------------------
# Pure-JAX reference (matches PyTorch semantics incl. ignore_index=-100).
# Uses the SAME prepared (bf16-rounded, pre-split) params as the kernel so the
# comparison is apples-to-apples.
# ----------------------------------------------------------------------------
def _reference(omics1_out, omics2_out, w1_pad, w2_pad, b_pad, num_labels, labels):
    x1 = omics1_out.astype(w1_pad.dtype).astype(jnp.float32)
    x2 = omics2_out.astype(w2_pad.dtype).astype(jnp.float32)
    logits = (x1 @ w1_pad.astype(jnp.float32)
              + x2 @ w2_pad.astype(jnp.float32)
              + b_pad)[:, :num_labels]
    if labels is None:
        return None, logits
    lse = jax.scipy.special.logsumexp(logits, axis=-1)
    safe_labels = jnp.where(labels < 0, 0, labels)
    true_logit = jnp.take_along_axis(logits, safe_labels[:, None], axis=-1)[:, 0]
    per_example = lse - true_logit
    valid = (labels != _IGNORE_INDEX).astype(jnp.float32)
    loss = jnp.sum(per_example * valid) / jnp.sum(valid)
    return loss, logits


if __name__ == "__main__":
    key = jax.random.PRNGKey(0)
    k1, k2, k3, k4, k5 = jax.random.split(key, 5)

    batch = 2
    hidden1 = 32          # omics1_config.hidden_size
    hidden2 = 32          # omics2_config.hidden_size
    num_labels = 4        # omics1_config.num_labels

    # Synthetic pooled backbone outputs (stand-ins for omics{1,2}_model(...)[1]).
    omics1_out = jax.random.normal(k1, (batch, hidden1), dtype=jnp.float32)
    omics2_out = jax.random.normal(k2, (batch, hidden2), dtype=jnp.float32)

    # Deterministic classifier parameters (nn.Linear(hidden1+hidden2, num_labels)).
    fan_in = hidden1 + hidden2
    bound = 1.0 / (fan_in ** 0.5)
    classifier_w = jax.random.uniform(
        k3, (num_labels, fan_in), minval=-bound, maxval=bound, dtype=jnp.float32)
    classifier_b = jax.random.uniform(
        k4, (num_labels,), minval=-bound, maxval=bound, dtype=jnp.float32)

    labels = jax.random.randint(k5, (batch,), 0, num_labels, dtype=jnp.int32)

    # One-time param prep (hoisted out of the forward hot path; bf16 weights).
    w1_pad, w2_pad, b_pad = prepare_classifier_params(
        classifier_w, classifier_b, hidden1, param_dtype=jnp.bfloat16)

    # --- path 1: labels given (single fused kernel: logits + CE loss) -------
    loss, logits = omics_omics_inter_forward(
        omics1_out, omics2_out, w1_pad, w2_pad, b_pad, num_labels, labels)
    jax.block_until_ready((loss, logits))

    ref_loss, ref_logits = _reference(
        omics1_out, omics2_out, w1_pad, w2_pad, b_pad, num_labels, labels)
    assert jnp.allclose(logits, ref_logits, atol=1e-4, rtol=1e-4), "logits mismatch"
    assert jnp.allclose(loss, ref_loss, atol=1e-4, rtol=1e-4), "loss mismatch"

    # --- path 2: ignore_index=-100 handling ---------------------------------
    labels_ign = labels.at[0].set(_IGNORE_INDEX)
    loss_i, logits_i = omics_omics_inter_forward(
        omics1_out, omics2_out, w1_pad, w2_pad, b_pad, num_labels, labels_ign)
    jax.block_until_ready((loss_i, logits_i))
    ref_loss_i, _ = _reference(
        omics1_out, omics2_out, w1_pad, w2_pad, b_pad, num_labels, labels_ign)
    assert jnp.allclose(loss_i, ref_loss_i, atol=1e-4, rtol=1e-4), \
        "ignore_index loss mismatch"

    # --- path 3: labels=None (logits only) -----------------------------------
    no_loss, logits_only = omics_omics_inter_forward(
        omics1_out, omics2_out, w1_pad, w2_pad, b_pad, num_labels, labels=None)
    logits_only = jax.block_until_ready(logits_only)
    assert no_loss is None
    assert jnp.allclose(logits_only, ref_logits, atol=1e-4, rtol=1e-4), \
        "no-label logits mismatch"

    print("KERNEL_OK")
</pallas_src>

<mosaic_0001>
module attributes {stable_mosaic.version = 11 : i64} {
  func.func @_fused_forward_kernel(%arg0: memref<2x32xf32, #tpu.memory_space<vmem>>, %arg1: memref<2x32xf32, #tpu.memory_space<vmem>>, %arg2: memref<32x128xbf16, #tpu.memory_space<vmem>>, %arg3: memref<32x128xbf16, #tpu.memory_space<vmem>>, %arg4: memref<1x128xf32, #tpu.memory_space<vmem>>, %arg5: memref<2x1xi32, #tpu.memory_space<vmem>>, %arg6: memref<2x128xf32, #tpu.memory_space<vmem>>, %arg7: memref<1x1xf32, #tpu.memory_space<vmem>>) attributes {dimension_semantics = [], scalar_prefetch = 0 : i64, scratch_operands = 0 : i64, tpu.core_type = #tpu.core_type<tc>} {
    %c0 = arith.constant 0 : index
    %c0_0 = arith.constant 0 : index
    %0 = vector.load %arg0[%c0, %c0_0] : memref<2x32xf32, #tpu.memory_space<vmem>>, vector<2x32xf32>
    %1 = arith.truncf %0 : vector<2x32xf32> to vector<2x32xbf16>
    %c0_1 = arith.constant 0 : index
    %c0_2 = arith.constant 0 : index
    %2 = vector.load %arg1[%c0_1, %c0_2] : memref<2x32xf32, #tpu.memory_space<vmem>>, vector<2x32xf32>
    %3 = arith.truncf %2 : vector<2x32xf32> to vector<2x32xbf16>
    %c0_3 = arith.constant 0 : index
    %c0_4 = arith.constant 0 : index
    %4 = vector.load %arg2[%c0_3, %c0_4] : memref<32x128xbf16, #tpu.memory_space<vmem>>, vector<32x128xbf16>
    %cst = arith.constant dense<0.000000e+00> : vector<2x128xf32>
    %5 = tpu.matmul %1, %4, %cst {dimension_numbers = #tpu.dot_dimension_numbers<[1], [0], [0], [1], [0, 0, 1, 1], [], []>} : vector<2x32xbf16>, vector<32x128xbf16>, vector<2x128xf32> -> vector<2x128xf32>
    %c0_5 = arith.constant 0 : index
    %c0_6 = arith.constant 0 : index
    %6 = vector.load %arg3[%c0_5, %c0_6] : memref<32x128xbf16, #tpu.memory_space<vmem>>, vector<32x128xbf16>
    %cst_7 = arith.constant dense<0.000000e+00> : vector<2x128xf32>
    %7 = tpu.matmul %3, %6, %cst_7 {dimension_numbers = #tpu.dot_dimension_numbers<[1], [0], [0], [1], [0, 0, 1, 1], [], []>} : vector<2x32xbf16>, vector<32x128xbf16>, vector<2x128xf32> -> vector<2x128xf32>
    %8 = arith.addf %5, %7 : vector<2x128xf32>
    %c0_8 = arith.constant 0 : index
    %c0_9 = arith.constant 0 : index
    %9 = vector.load %arg4[%c0_8, %c0_9] : memref<1x128xf32, #tpu.memory_space<vmem>>, vector<1x128xf32>
    %10 = vector.broadcast %9 : vector<1x128xf32> to vector<2x128xf32>
    %11 = arith.addf %8, %10 : vector<2x128xf32>
    %c0_10 = arith.constant 0 : index
    %c0_11 = arith.constant 0 : index
    %12 = vector.load %arg6[%c0_10, %c0_11] : memref<2x128xf32, #tpu.memory_space<vmem>>, vector<2x128xf32>
    tpu.vector_store %arg6[%c0_10, %c0_11], %11 {strides = array<i32>} : memref<2x128xf32, #tpu.memory_space<vmem>>, vector<2x128xf32>,
    %c0_12 = arith.constant 0 : index
    %c0_13 = arith.constant 0 : index
    %13 = vector.load %arg5[%c0_12, %c0_13] : memref<2x1xi32, #tpu.memory_space<vmem>>, vector<2x1xi32>
    %cst_14 = arith.constant dense<0xFF800000> : vector<2xf32>
    %14 = vector.multi_reduction <maximumf>, %11, %cst_14 [1] : vector<2x128xf32> to vector<2xf32>
    %15 = vector.shape_cast %14 : vector<2xf32> to vector<2x1xf32>
    %16 = vector.broadcast %15 : vector<2x1xf32> to vector<2x128xf32>
    %17 = arith.subf %11, %16 : vector<2x128xf32>
    %18 = math.exp %17 : vector<2x128xf32>
    %cst_15 = arith.constant dense<0.000000e+00> : vector<2xf32>
    %19 = vector.multi_reduction <add>, %18, %cst_15 [1] : vector<2x128xf32> to vector<2xf32>
    %20 = vector.shape_cast %19 : vector<2xf32> to vector<2x1xf32>
    %21 = math.log %20 : vector<2x1xf32>
    %22 = arith.addf %15, %21 : vector<2x1xf32>
    %23 = tpu.iota {dimensions = array<i32: 1>} : vector<2x128xi32>
    %24 = vector.broadcast %13 : vector<2x1xi32> to vector<2x128xi32>
    %25 = arith.cmpi eq, %23, %24 : vector<2x128xi32>
    %cst_16 = arith.constant 0.000000e+00 : f32
    %26 = vector.broadcast %cst_16 : f32 to vector<2x128xf32>
    %27 = arith.select %25, %11, %26 : vector<2x128xi1>, vector<2x128xf32>
    %cst_17 = arith.constant dense<0.000000e+00> : vector<2xf32>
    %28 = vector.multi_reduction <add>, %27, %cst_17 [1] : vector<2x128xf32> to vector<2xf32>
    %29 = vector.shape_cast %28 : vector<2xf32> to vector<2x1xf32>
    %30 = arith.subf %22, %29 : vector<2x1xf32>
    %c-100_i32 = arith.constant -100 : i32
    %31 = vector.broadcast %c-100_i32 : i32 to vector<2x1xi32>
    %32 = arith.cmpi ne, %13, %31 : vector<2x1xi32>
    %33 = arith.extui %32 : vector<2x1xi1> to vector<2x1xi32>
    %34 = arith.sitofp %33 : vector<2x1xi32> to vector<2x1xf32>
    %35 = arith.mulf %30, %34 : vector<2x1xf32>
    %cst_18 = arith.constant dense<0.000000e+00> : vector<1xf32>
    %36 = vector.multi_reduction <add>, %35, %cst_18 [0] : vector<2x1xf32> to vector<1xf32>
    %37 = vector.shape_cast %36 : vector<1xf32> to vector<1x1xf32>
    %cst_19 = arith.constant dense<0.000000e+00> : vector<1xf32>
    %38 = vector.multi_reduction <add>, %34, %cst_19 [0] : vector<2x1xf32> to vector<1xf32>
    %39 = vector.shape_cast %38 : vector<1xf32> to vector<1x1xf32>
    %40 = arith.divf %37, %39 : vector<1x1xf32>
    %c0_20 = arith.constant 0 : index
    %c0_21 = arith.constant 0 : index
    %41 = vector.load %arg7[%c0_20, %c0_21] : memref<1x1xf32, #tpu.memory_space<vmem>>, vector<1x1xf32>
    tpu.vector_store %arg7[%c0_20, %c0_21], %40 {strides = array<i32>} : memref<1x1xf32, #tpu.memory_space<vmem>>, vector<1x1xf32>,
    return
  }
}

</mosaic_0001>

<llo_original>
// kernel: tpu_custom_call.1
$region0: #{tpu_custom_call.1}
  #allocation0 [shape = 'u32[]', space=smem, size = 0x4, offset = 0x4, fixed_abs, tag = 'smem constant byte address 0x4 - core index']
  #allocation1 [shape = 'u32[144,128]{1,0:T(1,128)}', space=vmem, size = 0x12000, scoped, tag = 'internal scratch']
  %s0 = inlined_call_operand.vmem [shape: f32[2,32], index: 0, kind: input, shape index: {}]
  %s1 = inlined_call_operand.vmem [shape: f32[2,32], index: 1, kind: input, shape index: {}]
  %s2 = inlined_call_operand.hbm [shape: bf16[32,128], index: 2, kind: input, shape index: {}]
  %s3 = inlined_call_operand.hbm [shape: bf16[32,128], index: 3, kind: input, shape index: {}]
  %s4 = inlined_call_operand.vmem [shape: f32[1,128], index: 4, kind: input, shape index: {}]
  %s5 = inlined_call_operand.vmem [shape: s32[2,1], index: 5, kind: input, shape index: {}]
  %s6 = inlined_call_operand.hbm [shape: f32[2,128], index: 6, kind: output, shape index: {0}]
  %s7 = inlined_call_operand.hbm [shape: f32[1,1], index: 7, kind: output, shape index: {1}]
  %8 = xla_tuple %s6, %s7
  %s9 = sld [smem:[#allocation0]]
  $region50: #{tpu_custom_call.1} parent=0
    _
  %s11 = ssub.s32 1, %s9
  %s12 = scalar_select 0, %s11, %s9
  $region1: #{tpu_custom_call.1} parent=0
    #allocation2 [shape = 'u8[8192]{0}', space=vmem, size = 0x2000, scoped, tag = 'input window, operand 2, single buffered']
    #allocation3 [shape = 's32[1]{0}', space=sflag, size = 0x4, scoped, tag = 'scoped memory for tpu_custom_call.1']
    #allocation4 [shape = 's32[1]{0}', space=sflag, size = 0x4, scoped, tag = 'scoped memory for tpu_custom_call.1']
    #allocation5 [shape = 'u8[8192]{0}', space=vmem, size = 0x2000, scoped, tag = 'input window, operand 3, single buffered']
    #allocation6 [shape = 's32[1]{0}', space=sflag, size = 0x4, scoped, tag = 'scoped memory for tpu_custom_call.1']
    #allocation7 [shape = 'u8[1024]{0}', space=vmem, size = 0x400, scoped, tag = 'output window, operand 0, single buffered']
    #allocation8 [shape = 'u8[512]{0}', space=vmem, size = 0x400, scoped, tag = 'output window, operand 1, single buffered']
    #allocation9 [shape = 's32[1]{0}', space=sflag, size = 0x4, scoped, tag = 'scoped memory for tpu_custom_call.1']
    %13 = vsyncpa [#allocation3], 0
    %14 = vsyncpa [#allocation6], 0
    %15 = vsyncpa [#allocation4], 0
    %16 = vsyncpa [#allocation9], 0
    // Predicated region
    $region2: #{tpu_custom_call.1} parent=1 // pred_check
      _
    $region3: #{tpu_custom_call.1} parent=1 // pred_check_branch
      %18 = sbr.rel (0) target = $region5
    $region4: #{tpu_custom_call.1} parent=1 // pred_region
      _
    $region5: #{tpu_custom_call.1} parent=1 // pred_fallthru
      _
    // Predicated region
    $region6: #{tpu_custom_call.1} parent=1 // pred_check
      _
    $region7: #{tpu_custom_call.1} parent=1 // pred_check_branch
      %20 = sbr.rel (0) target = $region9
    $region8: #{tpu_custom_call.1} parent=1 // pred_region
      _
    $region9: #{tpu_custom_call.1} parent=1 // pred_fallthru
      _
    // Predicated region
    $region10: #{tpu_custom_call.1} parent=1 // pred_check
      _
    $region11: #{tpu_custom_call.1} parent=1 // pred_check_branch
      %22 = sbr.rel (0) target = $region13
    $region12: #{tpu_custom_call.1} parent=1 // pred_region
      %s24 = ssub.s32 256, 256
      %25 = vsyncadd [#allocation3], %s24
      %s26 = sshll.u32 [#allocation2], 4
      %s27 = int_to_ptr.vmem [resolvable:$true] %s26
      %32 = dma.hbm_to_vmem [thread:$0]  %s2, 256, %s27, [#allocation3], 64, 64, 4
    $region13: #{tpu_custom_call.1} parent=1 // pred_fallthru
      _
    // Predicated region
    $region14: #{tpu_custom_call.1} parent=1 // pred_check
      _
    $region15: #{tpu_custom_call.1} parent=1 // pred_check_branch
      %34 = sbr.rel (0) target = $region17
    $region16: #{tpu_custom_call.1} parent=1 // pred_region
      %s36 = ssub.s32 256, 256
      %37 = vsyncadd [#allocation6], %s36
      %s38 = sshll.u32 [#allocation5], 4
      %s39 = int_to_ptr.vmem [resolvable:$true] %s38
      %44 = dma.hbm_to_vmem [thread:$0]  %s3, 256, %s39, [#allocation6], 64, 64, 4
    $region17: #{tpu_custom_call.1} parent=1 // pred_fallthru
      _
    // Predicated region
    $region18: #{tpu_custom_call.1} parent=1 // pred_check
      _
    $region19: #{tpu_custom_call.1} parent=1 // pred_check_branch
      %46 = sbr.rel (0) target = $region21
    $region20: #{tpu_custom_call.1} parent=1 // pred_region
      _
    $region21: #{tpu_custom_call.1} parent=1 // pred_fallthru
      _
    // Predicated region
    $region22: #{tpu_custom_call.1} parent=1 // pred_check
      _
    $region23: #{tpu_custom_call.1} parent=1 // pred_check_branch
      %48 = sbr.rel (0) target = $region25
    $region24: #{tpu_custom_call.1} parent=1 // pred_region
      _
    $region25: #{tpu_custom_call.1} parent=1 // pred_fallthru
      _
    // Predicated region
    $region26: #{tpu_custom_call.1} parent=1 // pred_check
      _
    $region27: #{tpu_custom_call.1} parent=1 // pred_check_branch
      %50 = sbr.rel (0) target = $region29
    $region28: #{tpu_custom_call.1} parent=1 // pred_region
      %51 = dma.done [#allocation3], 256
    $region29: #{tpu_custom_call.1} parent=1 // pred_fallthru
      _
    // Predicated region
    $region30: #{tpu_custom_call.1} parent=1 // pred_check
      _
    $region31: #{tpu_custom_call.1} parent=1 // pred_check_branch
      %53 = sbr.rel (0) target = $region33
    $region32: #{tpu_custom_call.1} parent=1 // pred_region
      %54 = dma.done [#allocation6], 256
    $region33: #{tpu_custom_call.1} parent=1 // pred_fallthru
      _
    %v56 = vld [vmem:[%s0] sm:$0x3]
    %v57 = vpack.c.bf16 %v56, %v56
    %v58 = vld [vmem:[%s1] sm:$0x3]
    %v59 = vpack.c.bf16 %v58, %v58
    %v60 = vld [vmem:[#allocation2] sm:$0xf]
    %v61 = vld [vmem:[#allocation2 + $0x4] sm:$0xf]
    %v62 = vld [vmem:[#allocation2 + $0x8] sm:$0xf]
    %v63 = vld [vmem:[#allocation2 + $0xc] sm:$0xf]
    %v64 = vld [vmem:[#allocation5] sm:$0xf]
    %v65 = vld [vmem:[#allocation5 + $0x4] sm:$0xf]
    %v66 = vld [vmem:[#allocation5 + $0x8] sm:$0xf]
    %v67 = vld [vmem:[#allocation5 + $0xc] sm:$0xf]
    %v72 = vunpack.c.l.b16 %v64
    %v73 = vunpack.c.l.b16 %v65
    %v74 = vunpack.c.l.b16 %v66
    %v75 = vunpack.c.l.b16 %v67
    %v76 = vpack.c.b16 %v73, %v72
    %v77 = vpack.c.b16 %v75, %v74
    %vm80 = vcmask 261120
    %v82 = vsel %vm80, %v59, 0
    %84 = vmatprep.subr.bf16.mxu0 0
    %85 = vmatpush1.bf16.msra.mxu0 %v76
    %86 = vmatprep.subr.bf16.mxu0 0
    %87 = vmatpush1.bf16.msra.mxu0 %v77
    %88 = vmatprep.subr.bf16.mxu0 0
    %89 = vmatpush1.bf16.msra.mxu0 0
    %90 = vmatprep.subr.bf16.mxu0 0
    %91 = vmatpush1.bf16.msra.mxu0 0
    %92 = vmatprep.subr.bf16.mxu0 0
    %93 = vmatpush1.bf16.msra.mxu0 0
    %94 = vmatprep.subr.bf16.mxu0 0
    %95 = vmatpush1.bf16.msra.mxu0 0
    %96 = vmatprep.subr.bf16.mxu0 0
    %97 = vmatpush1.bf16.msra.mxu0 0
    %98 = vmatprep.subr.bf16.mxu0 0
    %99 = vmatpush1.bf16.msra.mxu0 0
    %100 = vmatprep.subr.bf16.mxu0 0
    %101 = vmatpush1.bf16.msra.mxu0 0
    %102 = vmatprep.subr.bf16.mxu0 0
    %103 = vmatpush1.bf16.msra.mxu0 0
    %104 = vmatprep.subr.bf16.mxu0 0
    %105 = vmatpush1.bf16.msra.mxu0 0
    %106 = vmatprep.subr.bf16.mxu0 0
    %107 = vmatpush1.bf16.msra.mxu0 0
    %108 = vmatprep.subr.bf16.mxu0 0
    %109 = vmatpush1.bf16.msra.mxu0 0
    %110 = vmatprep.subr.bf16.mxu0 0
    %111 = vmatpush1.bf16.msra.mxu0 0
    %112 = vmatprep.subr.bf16.mxu0 0
    %113 = vmatpush1.bf16.msra.mxu0 0
    %114 = vmatprep.subr.bf16.mxu0 0
    %115 = vmatpush1.bf16.msra.mxu0 0
    %116 = vmatprep.mubr.bf16.mxu0 0
    %117 = vmatmul.mubr.bf16.gmra.mrb[0].mxu0 %v82
    %v118 = vpop.f32.mrb[0].mxu0
    %v119 = vadd.f32 0.0, %v118
    %v120 = vpop.f32.mrb[0].mxu0
    %v121 = vpop.f32.mrb[0].mxu0
    %v122 = vpop.f32.mrb[0].mxu0
    %123 = vdwg.mxu0
    %v128 = vunpack.c.l.b16 %v60
    %v129 = vunpack.c.l.b16 %v61
    %v130 = vunpack.c.l.b16 %v62
    %v131 = vunpack.c.l.b16 %v63
    %v132 = vpack.c.b16 %v129, %v128
    %v133 = vpack.c.b16 %v131, %v130
    %v137 = vsel %vm80, %v57, 0
    %139 = vmatprep.subr.bf16.mxu0 0
    %140 = vmatpush1.bf16.msra.mxu0 %v132
    %141 = vmatprep.subr.bf16.mxu0 0
    %142 = vmatpush1.bf16.msra.mxu0 %v133
    %143 = vmatprep.subr.bf16.mxu0 0
    %144 = vmatpush1.bf16.msra.mxu0 0
    %145 = vmatprep.subr.bf16.mxu0 0
    %146 = vmatpush1.bf16.msra.mxu0 0
    %147 = vmatprep.subr.bf16.mxu0 0
    %148 = vmatpush1.bf16.msra.mxu0 0
    %149 = vmatprep.subr.bf16.mxu0 0
    %150 = vmatpush1.bf16.msra.mxu0 0
    %151 = vmatprep.subr.bf16.mxu0 0
    %152 = vmatpush1.bf16.msra.mxu0 0
    %153 = vmatprep.subr.bf16.mxu0 0
    %154 = vmatpush1.bf16.msra.mxu0 0
    %155 = vmatprep.subr.bf16.mxu0 0
    %156 = vmatpush1.bf16.msra.mxu0 0
    %157 = vmatprep.subr.bf16.mxu0 0
    %158 = vmatpush1.bf16.msra.mxu0 0
    %159 = vmatprep.subr.bf16.mxu0 0
    %160 = vmatpush1.bf16.msra.mxu0 0
    %161 = vmatprep.subr.bf16.mxu0 0
    %162 = vmatpush1.bf16.msra.mxu0 0
    %163 = vmatprep.subr.bf16.mxu0 0
    %164 = vmatpush1.bf16.msra.mxu0 0
    %165 = vmatprep.subr.bf16.mxu0 0
    %166 = vmatpush1.bf16.msra.mxu0 0
    %167 = vmatprep.subr.bf16.mxu0 0
    %168 = vmatpush1.bf16.msra.mxu0 0
    %169 = vmatprep.subr.bf16.mxu0 0
    %170 = vmatpush1.bf16.msra.mxu0 0
    %171 = vmatprep.mubr.bf16.mxu0 0
    %172 = vmatmul.mubr.bf16.gmra.mrb[0].mxu0 %v137
    %v173 = vpop.f32.mrb[0].mxu0
    %v174 = vadd.f32 %v119, %v173
    %v175 = vpop.f32.mrb[0].mxu0
    %v176 = vpop.f32.mrb[0].mxu0
    %v177 = vpop.f32.mrb[0].mxu0
    %178 = vdwg.mxu0
    %v179 = vld [vmem:[%s4] sm:$0x1]
    %v181 = vlaneseq
    %v182 = vshrl.u32 %v181, 7
    %v183 = vsub.s32 0, %v182
    %v184 = vrot.slane %v179, %v183
    %v186 = vadd.f32 %v174, %v184
    %187 = vst [vmem:[#allocation7] sm:$0x3] %v186
    %v188 = vld [vmem:[%s5] sm:$0x3]
    %vm189 = vcmask 1041408
    %v190 = vsel %vm189, %v186, -inf
    %191 = vmax.xlane.f32.xlu0 %v190
    %v192 = vpop.xlane.xlu0 %191
    %v193 = vsub.f32 %v186, %v192
    %v194 = vmul.f32 %v193, 1.442695
    %v195 = vpow.pop %v194
    %v196 = vsel %vm189, %v195, 0.0
    %197 = vadd.xlane.f32.xlu0 %v196
    %v198 = vpop.xlane.xlu0 %197
    %v199 = vlog2.pop %v198
    %v200 = vmul.f32 %v199, 0.6931472
    %v201 = vadd.f32 %v192, %v200
    %v202 = vlaneseq
    %v203 = vand.u32 %v202, 127
    %204 = vset.pattern.permute.xlu0 0
    %205 = vperm.xlu0 %204, %v188
    %v206 = vpop.permute.xlu0 %205
    %vm207 = vcmp.eq.s32.totalorder %v203, %v206
    %v208 = vsel %vm207, %v186, 0.0
    %v209 = vsel %vm189, %v208, 0.0
    %210 = vadd.xlane.f32.xlu0 %v209
    %v211 = vpop.xlane.xlu0 %210
    %v212 = vsub.f32 %v201, %v211
    %vm213 = vcmp.ne.s32.totalorder %v188, 4294967196
    %v214 = vsel %vm213, 1, 0
    %v215 = vcvt.s32.f32 %v214
    %v216 = vmul.f32 %v212, %v215
    %vm217 = vcmask 1024
    %v218 = vsel %vm217, %v216, 0.0
    %v219 = vrot.slane %v218, 4
    %v220 = vadd.f32 %v218, %v219
    %v221 = vrot.slane %v220, 2
    %v222 = vadd.f32 %v220, %v221
    %v223 = vrot.slane %v222, 1
    %v224 = vadd.f32 %v222, %v223
    %v225 = vsel %vm217, %v215, 0.0
    %v226 = vrot.slane %v225, 4
    %v227 = vadd.f32 %v225, %v226
    %v228 = vrot.slane %v227, 2
    %v229 = vadd.f32 %v227, %v228
    %v230 = vrot.slane %v229, 1
    %v231 = vadd.f32 %v229, %v230
    %v232 = vrcp.pop %v231
    %v233 = vmul.f32 %v224, %v232
    %vm234 = vcmask 0
    %235 = vst.msk [vmem:[#allocation8] sm:$0x1] %vm234, %v233
    // Predicated region
    $region34: #{tpu_custom_call.1} parent=1 // pred_check
      _
    $region35: #{tpu_custom_call.1} parent=1 // pred_check_branch
      %237 = sbr.rel (0) target = $region37
    $region36: #{tpu_custom_call.1} parent=1 // pred_region
      %s239 = ssub.s32 32, 32
      %240 = vsyncadd [#allocation4], %s239
      %s242 = sshll.u32 [#allocation7], 4
      %s243 = int_to_ptr.vmem [resolvable:$true] %s242
      %245 = dma.vmem_to_hbm [thread:$0]  %s243, 32, %s6, [#allocation4]
    $region37: #{tpu_custom_call.1} parent=1 // pred_fallthru
      _
    // Predicated region
    $region38: #{tpu_custom_call.1} parent=1 // pred_check
      _
    $region39: #{tpu_custom_call.1} parent=1 // pred_check_branch
      %247 = sbr.rel (0) target = $region41
    $region40: #{tpu_custom_call.1} parent=1 // pred_region
      %s249 = ssub.s32 16, 16
      %250 = vsyncadd [#allocation9], %s249
      %s252 = sshll.u32 [#allocation8], 4
      %s253 = int_to_ptr.vmem [resolvable:$true] %s252
      %255 = dma.vmem_to_hbm [thread:$0]  %s253, 16, %s7, [#allocation9]
    $region41: #{tpu_custom_call.1} parent=1 // pred_fallthru
      _
    // Predicated region
    $region42: #{tpu_custom_call.1} parent=1 // pred_check
      _
    $region43: #{tpu_custom_call.1} parent=1 // pred_check_branch
      %257 = sbr.rel (0) target = $region45
    $region44: #{tpu_custom_call.1} parent=1 // pred_region
      %258 = dma.done [#allocation4], 32
    $region45: #{tpu_custom_call.1} parent=1 // pred_fallthru
      _
    // Predicated region
    $region46: #{tpu_custom_call.1} parent=1 // pred_check
      _
    $region47: #{tpu_custom_call.1} parent=1 // pred_check_branch
      %260 = sbr.rel (0) target = $region49
    $region48: #{tpu_custom_call.1} parent=1 // pred_region
      %261 = dma.done [#allocation9], 16
    $region49: #{tpu_custom_call.1} parent=1 // pred_fallthru
      _
    %262 = vsyncpa [#allocation3], 1
    %263 = vsyncpa [#allocation6], 1
    %264 = vsyncpa [#allocation4], 1
    %265 = vsyncpa [#allocation9], 1

</llo_original>
